<compile_context>
chip_gen: v5e
topology: v5e:2x2
jax: 0.10.0
libtpu: 0.0.40
codegen_flags: <defaults>
</compile_context>

<pallas_src>
import jax
import jax.numpy as jnp
from jax.experimental import pallas as pl
from jax.experimental.pallas import tpu as pltpu

THRESH = 1.0    # HeavisideBoxcarCall(thresh=1.0), strict '>' per input.gt(thresh)
LANE = 128
TILE_R = 2048   # (2048, 128) f32 = 1 MiB per tile per stream


def lif_kernel(mem_ref, spike_before_ref, decay_ref, i_in_ref,
               mem_out_ref, spike_out_ref):
    new_mem = (mem_ref[...] * decay_ref[...] * (1.0 - spike_before_ref[...])
               + i_in_ref[...])
    mem_out_ref[...] = new_mem
    spike_out_ref[...] = (new_mem > THRESH).astype(new_mem.dtype)


def lif_node(mem, spike_before, decay, i_in):
    """mem / spike_before / decay / I_in: same-shape float arrays (NCHW)."""
    orig_shape = mem.shape
    n_elem = mem.size
    dtype = mem.dtype

    # Lane-dense 2-D view. Contiguous reshape is free when n_elem % 128 == 0.
    pad = (-n_elem) % LANE
    rows = (n_elem + pad) // LANE

    def to_slab(x):
        x = x.reshape(-1)
        if pad:
            x = jnp.pad(x, (0, pad))
        return x.reshape(rows, LANE)

    mem2, spk2, dec2, iin2 = map(to_slab, (mem, spike_before, decay, i_in))

    # Largest tile that makes sense for this problem size (multiple of 8
    # sublanes); partial trailing blocks are masked by Pallas automatically.
    tile_r = min(TILE_R, ((rows + 7) // 8) * 8)
    grid = (pl.cdiv(rows, tile_r),)
    block = pl.BlockSpec((tile_r, LANE), lambda i: (i, 0))

    itemsize = jnp.dtype(dtype).itemsize
    cost = pl.CostEstimate(
        flops=4 * n_elem,
        transcendentals=0,
        bytes_accessed=6 * n_elem * itemsize,  # 4 reads + 2 writes
    )

    new_mem2, spike2 = pl.pallas_call(
        lif_kernel,
        out_shape=(
            jax.ShapeDtypeStruct((rows, LANE), dtype),
            jax.ShapeDtypeStruct((rows, LANE), dtype),
        ),
        grid=grid,
        in_specs=[block, block, block, block],
        out_specs=(block, block),
        # new_mem reuses mem's HBM buffer; spike reuses spike_before's buffer.
        input_output_aliases={0: 0, 1: 1},
        compiler_params=pltpu.CompilerParams(
            dimension_semantics=("parallel",),
            vmem_limit_bytes=32 * 1024 * 1024,
        ),
        cost_estimate=cost,
    )(mem2, spk2, dec2, iin2)

    def from_slab(x):
        x = x.reshape(-1)
        if pad:
            x = x[:n_elem]
        return x.reshape(orig_shape)

    return from_slab(new_mem2), from_slab(spike2)


if __name__ == "__main__":
    key = jax.random.PRNGKey(0)
    k1, k2, k3, k4 = jax.random.split(key, 4)

    shape = (2, 4, 16, 16)  # N, C, H, W
    mem = jax.random.normal(k1, shape, dtype=jnp.float32)
    spike_before = (jax.random.uniform(k2, shape) > 0.5).astype(jnp.float32)
    decay = jax.random.uniform(k3, shape, dtype=jnp.float32)
    i_in = jax.random.normal(k4, shape, dtype=jnp.float32)

    new_mem, spike = lif_node(mem, spike_before, decay, i_in)
    jax.block_until_ready((new_mem, spike))

    # Plain-JAX reference check.
    ref_mem = mem * decay * (1.0 - spike_before) + i_in
    ref_spike = (ref_mem > THRESH).astype(jnp.float32)
    assert jnp.allclose(new_mem, ref_mem, atol=1e-6)
    assert jnp.array_equal(spike, ref_spike)

    print("KERNEL_OK")
</pallas_src>

<mosaic_0001>
module attributes {stable_mosaic.version = 11 : i64} {
  func.func @lif_kernel(%arg0: i32, %arg1: memref<16x128xf32, #tpu.memory_space<vmem>>, %arg2: memref<16x128xf32, #tpu.memory_space<vmem>>, %arg3: memref<16x128xf32, #tpu.memory_space<vmem>>, %arg4: memref<16x128xf32, #tpu.memory_space<vmem>>, %arg5: memref<16x128xf32, #tpu.memory_space<vmem>>, %arg6: memref<16x128xf32, #tpu.memory_space<vmem>>) attributes {dimension_semantics = [#tpu.dimension_semantics<parallel>], iteration_bounds = array<i64: 1>, scalar_prefetch = 0 : i64, scratch_operands = 0 : i64, tpu.core_type = #tpu.core_type<tc>, window_params = [{transform_indices = @transform_0, window_bounds = array<i64: 16, 128>}, {transform_indices = @transform_1, window_bounds = array<i64: 16, 128>}, {transform_indices = @transform_2, window_bounds = array<i64: 16, 128>}, {transform_indices = @transform_3, window_bounds = array<i64: 16, 128>}, {transform_indices = @transform_4, window_bounds = array<i64: 16, 128>}, {transform_indices = @transform_5, window_bounds = array<i64: 16, 128>}]} {
    %c0 = arith.constant 0 : index
    %c0_0 = arith.constant 0 : index
    %0 = vector.load %arg1[%c0, %c0_0] : memref<16x128xf32, #tpu.memory_space<vmem>>, vector<16x128xf32>
    %c0_1 = arith.constant 0 : index
    %c0_2 = arith.constant 0 : index
    %1 = vector.load %arg3[%c0_1, %c0_2] : memref<16x128xf32, #tpu.memory_space<vmem>>, vector<16x128xf32>
    %2 = arith.mulf %0, %1 : vector<16x128xf32>
    %c0_3 = arith.constant 0 : index
    %c0_4 = arith.constant 0 : index
    %3 = vector.load %arg2[%c0_3, %c0_4] : memref<16x128xf32, #tpu.memory_space<vmem>>, vector<16x128xf32>
    %cst = arith.constant 1.000000e+00 : f32
    %4 = vector.broadcast %cst : f32 to vector<16x128xf32>
    %5 = arith.subf %4, %3 : vector<16x128xf32>
    %6 = arith.mulf %2, %5 : vector<16x128xf32>
    %c0_5 = arith.constant 0 : index
    %c0_6 = arith.constant 0 : index
    %7 = vector.load %arg4[%c0_5, %c0_6] : memref<16x128xf32, #tpu.memory_space<vmem>>, vector<16x128xf32>
    %8 = arith.addf %6, %7 : vector<16x128xf32>
    %c0_7 = arith.constant 0 : index
    %c0_8 = arith.constant 0 : index
    %9 = vector.load %arg5[%c0_7, %c0_8] : memref<16x128xf32, #tpu.memory_space<vmem>>, vector<16x128xf32>
    tpu.vector_store %arg5[%c0_7, %c0_8], %8 {strides = array<i32>} : memref<16x128xf32, #tpu.memory_space<vmem>>, vector<16x128xf32>,
    %cst_9 = arith.constant 1.000000e+00 : f32
    %10 = vector.broadcast %cst_9 : f32 to vector<16x128xf32>
    %11 = arith.cmpf ogt, %8, %10 : vector<16x128xf32>
    %12 = arith.extui %11 : vector<16x128xi1> to vector<16x128xi32>
    %13 = arith.sitofp %12 : vector<16x128xi32> to vector<16x128xf32>
    %c0_10 = arith.constant 0 : index
    %c0_11 = arith.constant 0 : index
    %14 = vector.load %arg6[%c0_10, %c0_11] : memref<16x128xf32, #tpu.memory_space<vmem>>, vector<16x128xf32>
    tpu.vector_store %arg6[%c0_10, %c0_11], %13 {strides = array<i32>} : memref<16x128xf32, #tpu.memory_space<vmem>>, vector<16x128xf32>,
    return
  }
  func.func @transform_0(%arg0: i32) -> (i32, i32) {
    %c0_i32 = arith.constant 0 : i32
    %c0_i32_0 = arith.constant 0 : i32
    return %arg0, %c0_i32 : i32, i32
  }
  func.func @transform_1(%arg0: i32) -> (i32, i32) {
    %c0_i32 = arith.constant 0 : i32
    %c0_i32_0 = arith.constant 0 : i32
    return %arg0, %c0_i32 : i32, i32
  }
  func.func @transform_2(%arg0: i32) -> (i32, i32) {
    %c0_i32 = arith.constant 0 : i32
    %c0_i32_0 = arith.constant 0 : i32
    return %arg0, %c0_i32 : i32, i32
  }
  func.func @transform_3(%arg0: i32) -> (i32, i32) {
    %c0_i32 = arith.constant 0 : i32
    %c0_i32_0 = arith.constant 0 : i32
    return %arg0, %c0_i32 : i32, i32
  }
  func.func @transform_4(%arg0: i32) -> (i32, i32) {
    %c0_i32 = arith.constant 0 : i32
    %c0_i32_0 = arith.constant 0 : i32
    return %arg0, %c0_i32 : i32, i32
  }
  func.func @transform_5(%arg0: i32) -> (i32, i32) {
    %c0_i32 = arith.constant 0 : i32
    %c0_i32_0 = arith.constant 0 : i32
    return %arg0, %c0_i32 : i32, i32
  }
}

</mosaic_0001>

<llo_original>
// kernel: tpu_custom_call.1
$region0: #{tpu_custom_call.1}
  #allocation0 [shape = 'u32[]', space=smem, size = 0x4, offset = 0x4, fixed_abs, tag = 'smem constant byte address 0x4 - core index']
  #allocation1 [shape = 'u32[72,128]{1,0:T(1,128)}', space=vmem, size = 0x9000, scoped, tag = 'internal scratch']
  %s0 = inlined_call_operand.hbm [shape: f32[16,128], index: 0, kind: input, shape index: {}, may-alias: {0,4}]
  %s1 = inlined_call_operand.hbm [shape: f32[16,128], index: 1, kind: input, shape index: {}, may-alias: {1,5}]
  %s2 = inlined_call_operand.vmem [shape: f32[16,128], index: 2, kind: input, shape index: {}]
  %s3 = inlined_call_operand.vmem [shape: f32[16,128], index: 3, kind: input, shape index: {}]
  %s4 = inlined_call_operand.hbm [shape: f32[16,128], index: 4, kind: output, shape index: {0}, may-alias: {0,4}]
  %s5 = inlined_call_operand.hbm [shape: f32[16,128], index: 5, kind: output, shape index: {1}, may-alias: {1,5}]
  %6 = xla_tuple %s4, %s5
  %s7 = sld [smem:[#allocation0]]
  $region42: #{tpu_custom_call.1} parent=0
    _
  %s9 = ssub.s32 1, %s7
  %s10 = scalar_select 0, %s9, %s7
  $region1: #{tpu_custom_call.1} parent=0
    #allocation2 [shape = 'u8[8192]{0}', space=vmem, size = 0x2000, scoped, tag = 'input window, operand 0, single buffered']
    #allocation3 [shape = 's32[1]{0}', space=sflag, size = 0x4, scoped, tag = 'scoped memory for tpu_custom_call.1']
    #allocation4 [shape = 's32[1]{0}', space=sflag, size = 0x4, scoped, tag = 'scoped memory for tpu_custom_call.1']
    #allocation5 [shape = 'u8[8192]{0}', space=vmem, size = 0x2000, scoped, tag = 'input window, operand 1, single buffered']
    #allocation6 [shape = 's32[1]{0}', space=sflag, size = 0x4, scoped, tag = 'scoped memory for tpu_custom_call.1']
    #allocation7 [shape = 'u8[8192]{0}', space=vmem, size = 0x2000, scoped, tag = 'output window, operand 0, single buffered']
    #allocation8 [shape = 'u8[8192]{0}', space=vmem, size = 0x2000, scoped, tag = 'output window, operand 1, single buffered']
    #allocation9 [shape = 's32[1]{0}', space=sflag, size = 0x4, scoped, tag = 'scoped memory for tpu_custom_call.1']
    %11 = vsyncpa [#allocation3], 0
    %12 = vsyncpa [#allocation6], 0
    %13 = vsyncpa [#allocation4], 0
    %14 = vsyncpa [#allocation9], 0
    // Predicated region
    $region2: #{tpu_custom_call.1} parent=1 // pred_check
      _
    $region3: #{tpu_custom_call.1} parent=1 // pred_check_branch
      %16 = sbr.rel (0) target = $region5
    $region4: #{tpu_custom_call.1} parent=1 // pred_region
      %18 = vsyncadd [#allocation3], 0
      %s19 = sshll.u32 %s0, 4
      %s20 = int_to_ptr.hbm [resolvable:$true] %s19
      %s21 = sshll.u32 [#allocation2], 4
      %s22 = int_to_ptr.vmem [resolvable:$true] %s21
      %27 = dma.hbm_to_vmem [thread:$0]  %s20, 256, %s22, [#allocation3], 128, 128, 8
    $region5: #{tpu_custom_call.1} parent=1 // pred_fallthru
      _
    // Predicated region
    $region6: #{tpu_custom_call.1} parent=1 // pred_check
      _
    $region7: #{tpu_custom_call.1} parent=1 // pred_check_branch
      %29 = sbr.rel (0) target = $region9
    $region8: #{tpu_custom_call.1} parent=1 // pred_region
      %31 = vsyncadd [#allocation6], 0
      %s32 = sshll.u32 %s1, 4
      %s33 = int_to_ptr.hbm [resolvable:$true] %s32
      %s34 = sshll.u32 [#allocation5], 4
      %s35 = int_to_ptr.vmem [resolvable:$true] %s34
      %40 = dma.hbm_to_vmem [thread:$0]  %s33, 256, %s35, [#allocation6], 128, 128, 8
    $region9: #{tpu_custom_call.1} parent=1 // pred_fallthru
      _
    // Predicated region
    $region10: #{tpu_custom_call.1} parent=1 // pred_check
      _
    $region11: #{tpu_custom_call.1} parent=1 // pred_check_branch
      %42 = sbr.rel (0) target = $region13
    $region12: #{tpu_custom_call.1} parent=1 // pred_region
      _
    $region13: #{tpu_custom_call.1} parent=1 // pred_fallthru
      _
    // Predicated region
    $region14: #{tpu_custom_call.1} parent=1 // pred_check
      _
    $region15: #{tpu_custom_call.1} parent=1 // pred_check_branch
      %44 = sbr.rel (0) target = $region17
    $region16: #{tpu_custom_call.1} parent=1 // pred_region
      _
    $region17: #{tpu_custom_call.1} parent=1 // pred_fallthru
      _
    // Predicated region
    $region18: #{tpu_custom_call.1} parent=1 // pred_check
      _
    $region19: #{tpu_custom_call.1} parent=1 // pred_check_branch
      %46 = sbr.rel (0) target = $region21
    $region20: #{tpu_custom_call.1} parent=1 // pred_region
      %48 = dma.done [#allocation3], 256
    $region21: #{tpu_custom_call.1} parent=1 // pred_fallthru
      _
    // Predicated region
    $region22: #{tpu_custom_call.1} parent=1 // pred_check
      _
    $region23: #{tpu_custom_call.1} parent=1 // pred_check_branch
      %50 = sbr.rel (0) target = $region25
    $region24: #{tpu_custom_call.1} parent=1 // pred_region
      %52 = dma.done [#allocation6], 256
    $region25: #{tpu_custom_call.1} parent=1 // pred_fallthru
      _
    %v53 = vld [vmem:[#allocation2] sm:$0xff]
    %v54 = vld [vmem:[#allocation2 + $0x8] sm:$0xff]
    %v55 = vld [vmem:[%s2] sm:$0xff]
    %v56 = vld [vmem:[%s2 + $0x8] sm:$0xff]
    %v57 = vmul.f32 %v53, %v55
    %v58 = vmul.f32 %v54, %v56
    %v59 = vld [vmem:[#allocation5] sm:$0xff]
    %v60 = vld [vmem:[#allocation5 + $0x8] sm:$0xff]
    %v61 = vsub.f32 1.0, %v59
    %v62 = vsub.f32 1.0, %v60
    %v63 = vmul.f32 %v57, %v61
    %v64 = vmul.f32 %v58, %v62
    %v65 = vld [vmem:[%s3] sm:$0xff]
    %v66 = vld [vmem:[%s3 + $0x8] sm:$0xff]
    %v67 = vadd.f32 %v63, %v65
    %v68 = vadd.f32 %v64, %v66
    %69 = vst [vmem:[#allocation7] sm:$0xff] %v67
    %70 = vst [vmem:[#allocation7 + $0x8] sm:$0xff] %v68
    %vm71 = vcmp.gt.f32.partialorder %v67, 1.0
    %vm72 = vcmp.gt.f32.partialorder %v68, 1.0
    %v73 = vsel %vm71, 1, 0
    %v74 = vsel %vm72, 1, 0
    %v75 = vcvt.s32.f32 %v73
    %v76 = vcvt.s32.f32 %v74
    %77 = vst [vmem:[#allocation8] sm:$0xff] %v75
    %78 = vst [vmem:[#allocation8 + $0x8] sm:$0xff] %v76
    // Predicated region
    $region26: #{tpu_custom_call.1} parent=1 // pred_check
      _
    $region27: #{tpu_custom_call.1} parent=1 // pred_check_branch
      %80 = sbr.rel (0) target = $region29
    $region28: #{tpu_custom_call.1} parent=1 // pred_region
      %82 = vsyncadd [#allocation4], 0
      %s83 = sshll.u32 [#allocation7], 4
      %s84 = int_to_ptr.vmem [resolvable:$true] %s83
      %s85 = sshll.u32 %s4, 4
      %s86 = int_to_ptr.hbm [resolvable:$true] %s85
      %91 = dma.vmem_to_hbm [thread:$0]  %s84, 256, %s86, [#allocation4], 128, 128, 8
    $region29: #{tpu_custom_call.1} parent=1 // pred_fallthru
      _
    // Predicated region
    $region30: #{tpu_custom_call.1} parent=1 // pred_check
      _
    $region31: #{tpu_custom_call.1} parent=1 // pred_check_branch
      %93 = sbr.rel (0) target = $region33
    $region32: #{tpu_custom_call.1} parent=1 // pred_region
      %95 = vsyncadd [#allocation9], 0
      %s96 = sshll.u32 [#allocation8], 4
      %s97 = int_to_ptr.vmem [resolvable:$true] %s96
      %s98 = sshll.u32 %s5, 4
      %s99 = int_to_ptr.hbm [resolvable:$true] %s98
      %104 = dma.vmem_to_hbm [thread:$0]  %s97, 256, %s99, [#allocation9], 128, 128, 8
    $region33: #{tpu_custom_call.1} parent=1 // pred_fallthru
      _
    // Predicated region
    $region34: #{tpu_custom_call.1} parent=1 // pred_check
      _
    $region35: #{tpu_custom_call.1} parent=1 // pred_check_branch
      %106 = sbr.rel (0) target = $region37
    $region36: #{tpu_custom_call.1} parent=1 // pred_region
      %108 = dma.done [#allocation4], 256
    $region37: #{tpu_custom_call.1} parent=1 // pred_fallthru
      _
    // Predicated region
    $region38: #{tpu_custom_call.1} parent=1 // pred_check
      _
    $region39: #{tpu_custom_call.1} parent=1 // pred_check_branch
      %110 = sbr.rel (0) target = $region41
    $region40: #{tpu_custom_call.1} parent=1 // pred_region
      %112 = dma.done [#allocation9], 256
    $region41: #{tpu_custom_call.1} parent=1 // pred_fallthru
      _
    %113 = vsyncpa [#allocation3], 1
    %114 = vsyncpa [#allocation6], 1
    %115 = vsyncpa [#allocation4], 1
    %116 = vsyncpa [#allocation9], 1

</llo_original>
